<compile_context>
chip_gen: v7x
topology: tpu7x:2x2x1
jax: 0.10.0
libtpu: 0.0.40
codegen_flags: <defaults>
</compile_context>

<pallas_src>
import jax
import jax.numpy as jnp
from jax import lax
from jax.experimental import pallas as pl
from jax.experimental.pallas import tpu as pltpu


def _round_up(x, m):
    return ((x + m - 1) // m) * m


def _pick_block_seq(seq, dim, cap_rows=1024, vmem_budget_bytes=24 * 1024 * 1024):
    """Pick the row-tile size.

    Prefers multiple-of-8 divisors of `seq` (no padding -> no post-kernel slice copy).
    The cap is derived from a conservative per-row VMEM working-set estimate
    (~2 pos buffers + 2 out buffers + f32 compute headroom).
    """
    bytes_per_row = 6 * dim * 4
    cap = vmem_budget_bytes // max(bytes_per_row, 1)
    cap = max(8, min(cap_rows, (cap // 8) * 8))
    if seq % 8 == 0:
        start = min(cap, (seq // 8) * 8)
        for cand in range(start, 7, -8):
            if seq % cand == 0:
                return cand, False            # divides seq exactly -> no padding
    return min(_round_up(seq, 8), cap), True   # fallback: pad the sequence


def _embedding_kernel(ids_ref, conf_ref, cls_tab_ref, pos_tab_ref, o_ref):
    # ids_ref:     (block_seq, 1)     int32   token ids
    # conf_ref:    (block_seq, 1)     float32 MSAconf per-token scale
    # cls_tab_ref: (vocab_pad, dim)   class-embedding table (VMEM resident, native dtype)
    # pos_tab_ref: (block_seq, dim)   positional rows for this seq tile (native dtype)
    # o_ref:       (block_seq, dim)
    ids = ids_ref[...]                                  # (bs, 1) int32
    block_seq = ids.shape[0]
    vocab_pad = cls_tab_ref.shape[0]

    # One-hot gather on the MXU: (bs, vocab_pad) @ (vocab_pad, dim) -> (bs, dim).
    # One-hot cast to the table dtype (exact for 0/1) -> bf16 tables use bf16 MXU rate;
    # accumulate in f32.
    iota = lax.broadcasted_iota(jnp.int32, (block_seq, vocab_pad), 1)
    onehot = (iota == ids).astype(cls_tab_ref.dtype)
    cls = jnp.dot(onehot, cls_tab_ref[...], preferred_element_type=jnp.float32)

    out = (cls + pos_tab_ref[...].astype(jnp.float32)) * conf_ref[...]
    o_ref[...] = out.astype(o_ref.dtype)


def embedding_pallas(x_ids, msa_conf, cls_table, pos_table, *, block_seq=None):
    """(class_embedding(x) + pos_embedding(arange(seq))) * MSAconf.float()[..., None].

    x_ids:     (batch, seq)   integer token ids
    msa_conf:  (batch, seq)   confidence scale (any numeric dtype; cast to f32)
    cls_table: (vocab, dim)   class-embedding weights
    pos_table: (max_len, dim) positional-embedding weights
    returns    (batch, seq, dim), dtype = promote(cls_table.dtype, f32)
    """
    batch, seq = x_ids.shape
    vocab, dim = cls_table.shape
    max_len, pos_dim = pos_table.shape
    assert pos_dim == dim, "class/pos embedding dims must match"
    assert seq <= max_len, f"seq={seq} exceeds pos_embedding max_len={max_len}"

    # PyTorch multiplies by MSAconf.float() -> bf16 tables promote to f32 output.
    out_dtype = jnp.promote_types(cls_table.dtype, jnp.float32)

    if block_seq is None:
        block_seq, _ = _pick_block_seq(seq, dim)
    else:
        block_seq = max(8, _round_up(block_seq, 8))

    seq_pad = _round_up(seq, block_seq)
    nsb = seq_pad // block_seq                  # seq blocks per batch row
    rows_pad = batch * seq_pad

    ids = x_ids.astype(jnp.int32)
    conf = msa_conf.astype(jnp.float32)         # MSAconf.float()
    pos_used = pos_table[:seq]
    if seq_pad != seq:
        pad = ((0, 0), (0, seq_pad - seq))
        ids = jnp.pad(ids, pad)
        conf = jnp.pad(conf, pad)
        pos_used = jnp.pad(pos_used, ((0, seq_pad - seq), (0, 0)))
    ids2 = ids.reshape(rows_pad, 1)
    conf2 = conf.reshape(rows_pad, 1)

    # Class table: native dtype, vocab (one-hot contraction dim) padded to lane multiple.
    vocab_pad = _round_up(vocab, 128)
    cls_pad = cls_table
    if vocab_pad != vocab:
        cls_pad = jnp.pad(cls_pad, ((0, vocab_pad - vocab), (0, 0)))

    # Grid: (seq_blocks, batch) -- batch innermost, so the pos tile index is constant
    # across consecutive iterations and its DMA is skipped (read ~once total).
    grid = (nsb, batch)

    out = pl.pallas_call(
        _embedding_kernel,
        out_shape=jax.ShapeDtypeStruct((rows_pad, dim), out_dtype),
        grid_spec=pltpu.PrefetchScalarGridSpec(
            num_scalar_prefetch=0,
            grid=grid,
            in_specs=[
                pl.BlockSpec((block_seq, 1), lambda j, b: (b * nsb + j, 0)),   # ids
                pl.BlockSpec((block_seq, 1), lambda j, b: (b * nsb + j, 0)),   # MSAconf
                pl.BlockSpec((vocab_pad, dim), lambda j, b: (0, 0)),           # class table (resident)
                pl.BlockSpec((block_seq, dim), lambda j, b: (j, 0)),           # positional rows
            ],
            out_specs=pl.BlockSpec((block_seq, dim), lambda j, b: (b * nsb + j, 0)),
        ),
        compiler_params=pltpu.CompilerParams(
            dimension_semantics=("parallel", "parallel"),
            # 48 MiB: above v5e's 16 MiB / the 32 MiB default, safely below v7x's
            # 64 MiB physical VMEM; the block_seq cap keeps the working set under it.
            vmem_limit_bytes=48 * 1024 * 1024,
        ),
    )(ids2, conf2, cls_pad, pos_used)

    out = out.reshape(batch, seq_pad, dim)
    if seq_pad != seq:
        out = out[:, :seq, :]   # only on the padded fallback path
    return out


def embedding_ref(x_ids, msa_conf, cls_table, pos_table):
    # Pure-JAX reference matching the PyTorch forward exactly.
    seq = x_ids.shape[1]
    pos = jnp.arange(seq)
    emb = cls_table[x_ids] + pos_table[pos][None, :, :]
    return emb * msa_conf.astype(jnp.float32)[..., None]


if __name__ == "__main__":
    key = jax.random.PRNGKey(0)
    k1, k2, k3, k4 = jax.random.split(key, 4)

    batch, seq, dim = 2, 8, 32
    vocab_size, max_len = 30, 16

    x = jax.random.randint(k1, (batch, seq), 0, vocab_size, dtype=jnp.int32)
    msa_conf = jax.random.uniform(k2, (batch, seq), dtype=jnp.float32)
    cls_table = jax.random.normal(k3, (vocab_size, dim), dtype=jnp.float32)
    pos_table = jax.random.normal(k4, (max_len, dim), dtype=jnp.float32)

    # 1) default tile selection (block_seq divides seq -> no padding, no post-slice)
    out = embedding_pallas(x, msa_conf, cls_table, pos_table)
    jax.block_until_ready(out)
    ref = embedding_ref(x, msa_conf, cls_table, pos_table)
    assert out.shape == (batch, seq, dim) and out.dtype == jnp.float32
    assert jnp.allclose(out, ref, atol=1e-5, rtol=1e-5)

    # 2) multiple seq blocks per batch row (exercises the reordered (nsb, batch) grid)
    seq2 = 16
    x2 = jax.random.randint(k1, (batch, seq2), 0, vocab_size, dtype=jnp.int32)
    cf2 = jax.random.uniform(k2, (batch, seq2), dtype=jnp.float32)
    out2 = embedding_pallas(x2, cf2, cls_table, pos_table, block_seq=8)
    jax.block_until_ready(out2)
    assert jnp.allclose(out2, embedding_ref(x2, cf2, cls_table, pos_table),
                        atol=1e-5, rtol=1e-5)

    # 3) padded fallback path (seq not a multiple of 8)
    seq3 = 12
    x3 = jax.random.randint(k1, (batch, seq3), 0, vocab_size, dtype=jnp.int32)
    cf3 = jax.random.uniform(k2, (batch, seq3), dtype=jnp.float32)
    out3 = embedding_pallas(x3, cf3, cls_table, pos_table)
    jax.block_until_ready(out3)
    assert jnp.allclose(out3, embedding_ref(x3, cf3, cls_table, pos_table),
                        atol=1e-5, rtol=1e-5)

    print("KERNEL_OK")
</pallas_src>

<mosaic_0001>
module attributes {stable_mosaic.version = 11 : i64} {
  func.func @_embedding_kernel(%arg0: i32, %arg1: i32, %arg2: memref<8x1xi32, #tpu.memory_space<vmem>>, %arg3: memref<8x1xf32, #tpu.memory_space<vmem>>, %arg4: memref<128x32xf32, #tpu.memory_space<vmem>>, %arg5: memref<8x32xf32, #tpu.memory_space<vmem>>, %arg6: memref<8x32xf32, #tpu.memory_space<vmem>>) attributes {dimension_semantics = [#tpu.dimension_semantics<parallel>, #tpu.dimension_semantics<parallel>], iteration_bounds = array<i64: 1, 2>, scalar_prefetch = 0 : i64, scratch_operands = 0 : i64, tpu.core_type = #tpu.core_type<tc>, window_params = [{transform_indices = @transform_0, window_bounds = array<i64: 8, 1>}, {transform_indices = @transform_1, window_bounds = array<i64: 8, 1>}, {pipeline_mode = #tpu.pipeline_mode<synchronous>, transform_indices = @transform_2, window_bounds = array<i64: 128, 32>}, {transform_indices = @transform_3, window_bounds = array<i64: 8, 32>}, {transform_indices = @transform_4, window_bounds = array<i64: 8, 32>}]} {
    %c0 = arith.constant 0 : index
    %c0_0 = arith.constant 0 : index
    %0 = vector.load %arg2[%c0, %c0_0] : memref<8x1xi32, #tpu.memory_space<vmem>>, vector<8x1xi32>
    %1 = tpu.iota {dimensions = array<i32: 1>} : vector<8x128xi32>
    %2 = vector.broadcast %0 : vector<8x1xi32> to vector<8x128xi32>
    %3 = arith.cmpi eq, %1, %2 : vector<8x128xi32>
    %4 = arith.extui %3 : vector<8x128xi1> to vector<8x128xi32>
    %5 = arith.sitofp %4 : vector<8x128xi32> to vector<8x128xf32>
    %c0_1 = arith.constant 0 : index
    %c0_2 = arith.constant 0 : index
    %6 = vector.load %arg4[%c0_1, %c0_2] : memref<128x32xf32, #tpu.memory_space<vmem>>, vector<128x32xf32>
    %cst = arith.constant dense<0.000000e+00> : vector<8x32xf32>
    %7 = tpu.matmul %5, %6, %cst {dimension_numbers = #tpu.dot_dimension_numbers<[1], [0], [0], [1], [0, 0, 1, 1], [], []>} : vector<8x128xf32>, vector<128x32xf32>, vector<8x32xf32> -> vector<8x32xf32>
    %c0_3 = arith.constant 0 : index
    %c0_4 = arith.constant 0 : index
    %8 = vector.load %arg5[%c0_3, %c0_4] : memref<8x32xf32, #tpu.memory_space<vmem>>, vector<8x32xf32>
    %9 = arith.addf %7, %8 : vector<8x32xf32>
    %c0_5 = arith.constant 0 : index
    %c0_6 = arith.constant 0 : index
    %10 = vector.load %arg3[%c0_5, %c0_6] : memref<8x1xf32, #tpu.memory_space<vmem>>, vector<8x1xf32>
    %11 = vector.broadcast %10 : vector<8x1xf32> to vector<8x32xf32>
    %12 = arith.mulf %9, %11 : vector<8x32xf32>
    %c0_7 = arith.constant 0 : index
    %c0_8 = arith.constant 0 : index
    %13 = vector.load %arg6[%c0_7, %c0_8] : memref<8x32xf32, #tpu.memory_space<vmem>>, vector<8x32xf32>
    tpu.vector_store %arg6[%c0_7, %c0_8], %12 {strides = array<i32>} : memref<8x32xf32, #tpu.memory_space<vmem>>, vector<8x32xf32>,
    return
  }
  func.func @transform_0(%arg0: i32, %arg1: i32) -> (i32, i32) {
    %c1_i32 = arith.constant 1 : i32
    %0 = arith.muli %arg1, %c1_i32 : i32
    %1 = arith.addi %0, %arg0 : i32
    %c0_i32 = arith.constant 0 : i32
    %c0_i32_0 = arith.constant 0 : i32
    return %1, %c0_i32 : i32, i32
  }
  func.func @transform_1(%arg0: i32, %arg1: i32) -> (i32, i32) {
    %c1_i32 = arith.constant 1 : i32
    %0 = arith.muli %arg1, %c1_i32 : i32
    %1 = arith.addi %0, %arg0 : i32
    %c0_i32 = arith.constant 0 : i32
    %c0_i32_0 = arith.constant 0 : i32
    return %1, %c0_i32 : i32, i32
  }
  func.func @transform_2(%arg0: i32, %arg1: i32) -> (i32, i32) {
    %c0_i32 = arith.constant 0 : i32
    %c0_i32_0 = arith.constant 0 : i32
    %c0_i32_1 = arith.constant 0 : i32
    return %c0_i32, %c0_i32_0 : i32, i32
  }
  func.func @transform_3(%arg0: i32, %arg1: i32) -> (i32, i32) {
    %c0_i32 = arith.constant 0 : i32
    %c0_i32_0 = arith.constant 0 : i32
    return %arg0, %c0_i32 : i32, i32
  }
  func.func @transform_4(%arg0: i32, %arg1: i32) -> (i32, i32) {
    %c1_i32 = arith.constant 1 : i32
    %0 = arith.muli %arg1, %c1_i32 : i32
    %1 = arith.addi %0, %arg0 : i32
    %c0_i32 = arith.constant 0 : i32
    %c0_i32_0 = arith.constant 0 : i32
    return %1, %c0_i32 : i32, i32
  }
}

</mosaic_0001>

<llo_original>
// kernel: tpu_custom_call.1
$region0: #{tpu_custom_call.1}
  #allocation0 [shape = 'u32[]', space=smem, size = 0x4, offset = 0x4, fixed_abs, tag = 'smem constant byte address 0x4 - core index']
  #allocation1 [shape = 'u32[144,128]{1,0:T(1,128)}', space=vmem, size = 0x12000, scoped, tag = 'internal scratch']
  %s0 = inlined_call_operand.vmem [shape: s32[16,1], index: 0, kind: input, shape index: {}]
  %s1 = inlined_call_operand.vmem [shape: f32[16,1], index: 1, kind: input, shape index: {}]
  %s2 = inlined_call_operand.vmem [shape: f32[128,32], index: 2, kind: input, shape index: {}]
  %s3 = inlined_call_operand.vmem [shape: f32[8,32], index: 3, kind: input, shape index: {}]
  %s4 = inlined_call_operand.hbm [shape: f32[16,32], index: 4, kind: output, shape index: {}]
  %s5 = sld [smem:[#allocation0]]
  $region49: #{tpu_custom_call.1} parent=0
    _
  %s7 = ssub.s32 1, %s5
  %s8 = scalar_select 0, %s7, %s5
  $region1: #{tpu_custom_call.1} parent=0
    #allocation2 [shape = 'u8[8192]{0}', space=vmem, size = 0x2000, scoped, tag = 'output window, operand 0']
    #allocation3 [shape = 's32[2]{0}', space=sflag, size = 0x8, scoped, tag = 'scoped memory for tpu_custom_call.1']
    %9 = vsyncpa [#allocation3], 0
    %s10 = scalar_lea.sflag [#allocation3], 1
    %11 = vsyncpa %s10, 0
    loop: start=0, step=1, limit=4
    $region2: #{tpu_custom_call.1} parent=1 // loop_pre_header
      _
    $region3: #{tpu_custom_call.1} parent=1 // loop_header
      %s13 = sphi 0, %s17
      %p14 = scmp.ge.s32.totalorder %s13, 4
      %s20 = sphi 0, %s32
      %s21 = sphi 0, %s28
      %s22 = sphi 0, %s20
      %s23 = sphi 0, %s21
      %s24 = sphi 0, %s22
      %s25 = sphi 0, %s23
      %s37 = sphi 0, %s39
      %s40 = sphi 0, %s37
      %s41 = sphi 0, %s40
      %s57 = sphi 0, %s41
      %s65 = sphi 0, %s67
      %s68 = sphi 0, %s65
      %s69 = sphi 0, %s68
      %s85 = sphi 0, %s69
      %s89 = sphi 0, %s89
      %s91 = sphi 0, %s89
      %s92 = sphi 0, %s91
      %s106 = sphi 0, %s92
      %s112 = sphi 0, %s114
      %s115 = sphi 0, %s112
      %s116 = sphi 0, %s115
      %s132 = sphi 0, %s116
      %s140 = sphi 0, %s142
      %s143 = sphi 0, %s140
      %s144 = sphi 0, %s143
      %s160 = sphi 0, %s144
    $region4: #{tpu_custom_call.1} parent=1 // loop_header_branch
      %16 = sbr.rel (%p14) target = $region8
    $region5: #{tpu_custom_call.1} parent=1 // loop_body
      %s18 = ssub.s32 %s13, 1
      %s19 = ssub.s32 %s13, 2
      %s26 = sadd.s32 1, %s21
      %p27 = scmp.ge.s32.totalorder %s26, 2
      %s28 = scalar_select %p27, 0, %s26
      %s29 = sadd.s32 1, %s20
      %s30 = scalar_select %p27, %s29, %s20
      %p31 = scmp.ge.s32.totalorder %s30, 1
      %s32 = scalar_select %p31, 0, %s30
      %s33 = sadd.s32 %s21, %s20
      %s34 = sadd.s32 %s28, %s32
      %s35 = ssub.s32 %s33, %s34
      %p36 = scmp.eq.s32.totalorder %s35, 0
      %s38 = sadd.s32 %s37, 1
      %s39 = scalar_select %p36, %s37, %s38
      %p42 = pneg %p36
      %p43 = scmp.eq.s32.totalorder %s13, 1
      %p44 = por %p42, %p43
      %p45 = scmp.ne.s32.totalorder %s37, %s40
      %p46 = scmp.eq.s32.totalorder %s13, 0
      %p47 = por %p45, %p46
      %p48 = scmp.ne.s32.totalorder %s37, %s40
      %p49 = scmp.eq.s32.totalorder %s18, 1
      %p50 = por %p48, %p49
      %p51 = scmp.ne.s32.totalorder %s40, %s41
      %p52 = scmp.eq.s32.totalorder %s18, 0
      %p53 = por %p51, %p52
      %p54 = scmp.ne.s32.totalorder %s40, %s41
      %p55 = scmp.eq.s32.totalorder %s19, 1
      %p56 = por %p54, %p55
      %p58 = scmp.ne.s32.totalorder %s41, %s57
      %p59 = scmp.eq.s32.totalorder %s19, 0
      %p60 = por %p58, %p59
      %s61 = sadd.s32 %s21, %s20
      %s62 = sadd.s32 %s28, %s32
      %s63 = ssub.s32 %s61, %s62
      %p64 = scmp.eq.s32.totalorder %s63, 0
      %s66 = sadd.s32 %s65, 1
      %s67 = scalar_select %p64, %s65, %s66
      %p70 = pneg %p64
      %p71 = scmp.eq.s32.totalorder %s13, 1
      %p72 = por %p70, %p71
      %p73 = scmp.ne.s32.totalorder %s65, %s68
      %p74 = scmp.eq.s32.totalorder %s13, 0
      %p75 = por %p73, %p74
      %p76 = scmp.ne.s32.totalorder %s65, %s68
      %p77 = scmp.eq.s32.totalorder %s18, 1
      %p78 = por %p76, %p77
      %p79 = scmp.ne.s32.totalorder %s68, %s69
      %p80 = scmp.eq.s32.totalorder %s18, 0
      %p81 = por %p79, %p80
      %p82 = scmp.ne.s32.totalorder %s68, %s69
      %p83 = scmp.eq.s32.totalorder %s19, 1
      %p84 = por %p82, %p83
      %p86 = scmp.ne.s32.totalorder %s69, %s85
      %p87 = scmp.eq.s32.totalorder %s19, 0
      %p88 = por %p86, %p87
      %s90 = sadd.s32 %s89, 1
      %p93 = scmp.eq.s32.totalorder %s13, 1
      %p94 = scmp.ne.s32.totalorder %s89, %s91
      %p95 = scmp.eq.s32.totalorder %s13, 0
      %p96 = por %p94, %p95
      %p97 = scmp.ne.s32.totalorder %s89, %s91
      %p98 = scmp.eq.s32.totalorder %s18, 1
      %p99 = por %p97, %p98
      %p100 = scmp.ne.s32.totalorder %s91, %s92
      %p101 = scmp.eq.s32.totalorder %s18, 0
      %p102 = por %p100, %p101
      %p103 = scmp.ne.s32.totalorder %s91, %s92
      %p104 = scmp.eq.s32.totalorder %s19, 1
      %p105 = por %p103, %p104
      %p107 = scmp.ne.s32.totalorder %s92, %s106
      %p108 = scmp.eq.s32.totalorder %s19, 0
      %p109 = por %p107, %p108
      %s110 = ssub.s32 %s20, %s32
      %p111 = scmp.eq.s32.totalorder %s110, 0
      %s113 = sadd.s32 %s112, 1
      %s114 = scalar_select %p111, %s112, %s113
      %p117 = pneg %p111
      %p118 = scmp.eq.s32.totalorder %s13, 1
      %p119 = por %p117, %p118
      %p120 = scmp.ne.s32.totalorder %s112, %s115
      %p121 = scmp.eq.s32.totalorder %s13, 0
      %p122 = por %p120, %p121
      %p123 = scmp.ne.s32.totalorder %s112, %s115
      %p124 = scmp.eq.s32.totalorder %s18, 1
      %p125 = por %p123, %p124
      %p126 = scmp.ne.s32.totalorder %s115, %s116
      %p127 = scmp.eq.s32.totalorder %s18, 0
      %p128 = por %p126, %p127
      %p129 = scmp.ne.s32.totalorder %s115, %s116
      %p130 = scmp.eq.s32.totalorder %s19, 1
      %p131 = por %p129, %p130
      %p133 = scmp.ne.s32.totalorder %s116, %s132
      %p134 = scmp.eq.s32.totalorder %s19, 0
      %p135 = por %p133, %p134
      %s136 = sadd.s32 %s21, %s20
      %s137 = sadd.s32 %s28, %s32
      %s138 = ssub.s32 %s136, %s137
      %p139 = scmp.eq.s32.totalorder %s138, 0
      %s141 = sadd.s32 %s140, 1
      %s142 = scalar_select %p139, %s140, %s141
      %p145 = pneg %p139
      %p146 = scmp.eq.s32.totalorder %s13, 1
      %p147 = por %p145, %p146
      %p148 = scmp.ne.s32.totalorder %s140, %s143
      %p149 = scmp.eq.s32.totalorder %s13, 0
      %p150 = por %p148, %p149
      %p151 = scmp.ne.s32.totalorder %s140, %s143
      %p152 = scmp.eq.s32.totalorder %s18, 1
      %p153 = por %p151, %p152
      %p154 = scmp.ne.s32.totalorder %s143, %s144
      %p155 = scmp.eq.s32.totalorder %s18, 0
      %p156 = por %p154, %p155
      %p157 = scmp.ne.s32.totalorder %s143, %s144
      %p158 = scmp.eq.s32.totalorder %s19, 1
      %p159 = por %p157, %p158
      %p161 = scmp.ne.s32.totalorder %s144, %s160
      %p162 = scmp.eq.s32.totalorder %s19, 0
      %p163 = por %p161, %p162
      %p164 = scmp.le.s32.totalorder 1, %s13
      %p165 = scmp.lt.s32.totalorder %s13, 3
      %p166 = pnand %p164, %p165
      %p167 = pneg %p166
      // Predicated region
      $region9: #{tpu_custom_call.1} parent=5 // pred_check
        _
      $region10: #{tpu_custom_call.1} parent=5 // pred_check_branch
        %169 = sbr.rel (%p166) target = $region12
      $region11: #{tpu_custom_call.1} parent=5 // pred_region
        %s170 = ssub.s32 %s13, 1
        // Predicated region
        $region13: #{tpu_custom_call.1} parent=11 // pred_check
          %p171 = pneg %p102
        $region14: #{tpu_custom_call.1} parent=11 // pred_check_branch
          %173 = sbr.rel (%p171) target = $region16
        $region15: #{tpu_custom_call.1} parent=11 // pred_region
          _
        $region16: #{tpu_custom_call.1} parent=11 // pred_fallthru
          _
        // Predicated region
        $region17: #{tpu_custom_call.1} parent=11 // pred_check
          %p174 = pneg %p128
        $region18: #{tpu_custom_call.1} parent=11 // pred_check_branch
          %176 = sbr.rel (%p174) target = $region20
        $region19: #{tpu_custom_call.1} parent=11 // pred_region
          %p177 = scmp.lt.s32.totalorder %s22, 0
          %s178 = scalar_select %p177, %s22, 0
          %s179 = smul.addr %s178, 8
          %s180 = scalar_lea.vmem %s3, %s179
        $region20: #{tpu_custom_call.1} parent=11 // pred_fallthru
          _
      $region12: #{tpu_custom_call.1} parent=5 // pred_fallthru
        _
      %p181 = scmp.lt.s32.totalorder %s13, 2
      // Predicated region
      $region21: #{tpu_custom_call.1} parent=5 // pred_check
        %p182 = pneg %p181
      $region22: #{tpu_custom_call.1} parent=5 // pred_check_branch
        %184 = sbr.rel (%p182) target = $region24
      $region23: #{tpu_custom_call.1} parent=5 // pred_region
        // Predicated region
        $region25: #{tpu_custom_call.1} parent=23 // pred_check
          %p185 = pneg %p47
        $region26: #{tpu_custom_call.1} parent=23 // pred_check_branch
          %187 = sbr.rel (%p185) target = $region28
        $region27: #{tpu_custom_call.1} parent=23 // pred_region
          %s188 = sadd.s32 %s21, %s20
          %p189 = scmp.lt.s32.totalorder %s188, 1
          %s190 = scalar_select %p189, %s188, 1
          %s191 = smul.addr %s190, 8
          %s192 = scalar_lea.vmem %s0, %s191
          %s193 = sadd.s32 %s21, %s20
        $region28: #{tpu_custom_call.1} parent=23 // pred_fallthru
          _
        // Predicated region
        $region29: #{tpu_custom_call.1} parent=23 // pred_check
          %p194 = pneg %p75
        $region30: #{tpu_custom_call.1} parent=23 // pred_check_branch
          %196 = sbr.rel (%p194) target = $region32
        $region31: #{tpu_custom_call.1} parent=23 // pred_region
          %s197 = sadd.s32 %s21, %s20
          %p198 = scmp.lt.s32.totalorder %s197, 1
          %s199 = scalar_select %p198, %s197, 1
          %s200 = smul.addr %s199, 8
          %s201 = scalar_lea.vmem %s1, %s200
          %s202 = sadd.s32 %s21, %s20
        $region32: #{tpu_custom_call.1} parent=23 // pred_fallthru
          _
      $region24: #{tpu_custom_call.1} parent=5 // pred_fallthru
        _
      %p203 = scmp.le.s32.totalorder 1, %s13
      %p204 = scmp.lt.s32.totalorder %s13, 3
      %p205 = pnand %p203, %p204
      %p206 = pneg %p205
      // Predicated region
      $region33: #{tpu_custom_call.1} parent=5 // pred_check
        _
      $region34: #{tpu_custom_call.1} parent=5 // pred_check_branch
        %208 = sbr.rel (%p205) target = $region36
      $region35: #{tpu_custom_call.1} parent=5 // pred_region
        %s209 = ssub.s32 %s13, 1
        %s210 = sadd.s32 %s23, %s22
        %p211 = scmp.lt.s32.totalorder %s210, 1
        %s212 = scalar_select %p211, %s210, 1
        %s213 = smul.addr %s212, 8
        %s214 = scalar_lea.vmem %s0, %s213
        %p215 = pneg %p53
        %p216 = pneg %p50
        %s217 = sadd.s32 %s23, %s22
        %p218 = scmp.lt.s32.totalorder %s217, 1
        %s219 = scalar_select %p218, %s217, 1
        %s220 = smul.addr %s219, 8
        %s221 = scalar_lea.vmem %s1, %s220
        %p222 = pneg %p81
        %p223 = pneg %p78
        %p224 = pneg %p102
        %p225 = pneg %p99
        %p226 = scmp.lt.s32.totalorder %s22, 0
        %s227 = scalar_select %p226, %s22, 0
        %s228 = smul.addr %s227, 8
        %s229 = scalar_lea.vmem %s3, %s228
        %p230 = pneg %p128
        %p231 = pneg %p125
        %p232 = pneg %p156
        %p233 = pneg %p153
        %s234 = sand.u32 %s143, 1
        %s235 = scalar_lea.sflag [#allocation3], %s234
        %s236 = sand.u32 %s143, 1
        %s237 = smul.addr %s236, 8
        %s238 = scalar_lea.vmem [#allocation2], %s237
        %s239 = sadd.s32 %s23, %s22
        %p240 = scmp.lt.s32.totalorder %s239, 1
        %s241 = scalar_select %p240, %s239, 1
        %s242 = smul.addr %s241, 8
        %s243 = scalar_lea.vmem %s0, %s242
        %s244 = sadd.s32 %s23, %s22
        %s245 = sadd.s32 %s23, %s22
        %p246 = scmp.lt.s32.totalorder %s245, 1
        %s247 = scalar_select %p246, %s245, 1
        %s248 = smul.addr %s247, 8
        %s249 = scalar_lea.vmem %s1, %s248
        %s250 = sadd.s32 %s23, %s22
        %p251 = scmp.lt.s32.totalorder %s22, 0
        %s252 = scalar_select %p251, %s22, 0
        %s253 = smul.addr %s252, 8
        %s254 = scalar_lea.vmem %s3, %s253
        %s255 = sadd.s32 %s23, %s22
        %v256 = vld [vmem:[%s243] sm:$0xff]
        %v257 = vlaneseq
        %v258 = vand.u32 %v257, 127
        %259 = vset.pattern.permute.xlu0 0
        %260 = vperm.xlu0 %259, %v256
        %v261 = vpop.permute.xlu0 %260
        %vm262 = vcmp.eq.s32.totalorder %v258, %v261
        %v263 = vsel %vm262, 1, 0
        %v264 = vcvt.s32.f32 %v263
        %v265 = vld [vmem:[%s2] sm:$0xff]
        %v266 = vld [vmem:[%s2 + $0x8] sm:$0xff]
        %v267 = vld [vmem:[%s2 + $0x10] sm:$0xff]
        %v268 = vld [vmem:[%s2 + $0x18] sm:$0xff]
        %v269 = vld [vmem:[%s2 + $0x20] sm:$0xff]
        %v270 = vld [vmem:[%s2 + $0x28] sm:$0xff]
        %v271 = vld [vmem:[%s2 + $0x30] sm:$0xff]
        %v272 = vld [vmem:[%s2 + $0x38] sm:$0xff]
        %v273 = vld [vmem:[%s2 + $0x40] sm:$0xff]
        %v274 = vld [vmem:[%s2 + $0x48] sm:$0xff]
        %v275 = vld [vmem:[%s2 + $0x50] sm:$0xff]
        %v276 = vld [vmem:[%s2 + $0x58] sm:$0xff]
        %v277 = vld [vmem:[%s2 + $0x60] sm:$0xff]
        %v278 = vld [vmem:[%s2 + $0x68] sm:$0xff]
        %v279 = vld [vmem:[%s2 + $0x70] sm:$0xff]
        %v280 = vld [vmem:[%s2 + $0x78] sm:$0xff]
        %v281 = vld [vmem:[%s254] sm:$0xff]
        %282 = vmatprep.subr.mxu0 0.0
        %283 = vmatpush1.msra.mxu0 %v265
        %284 = vmatprep.subr.mxu0 0.0
        %285 = vmatpush1.msra.mxu0 %v266
        %286 = vmatprep.subr.mxu0 0.0
        %287 = vmatpush1.msra.mxu0 %v267
        %288 = vmatprep.subr.mxu0 0.0
        %289 = vmatpush1.msra.mxu0 %v268
        %290 = vmatprep.subr.mxu0 0.0
        %291 = vmatpush1.msra.mxu0 %v269
        %292 = vmatprep.subr.mxu0 0.0
        %293 = vmatpush1.msra.mxu0 %v270
        %294 = vmatprep.subr.mxu0 0.0
        %295 = vmatpush1.msra.mxu0 %v271
        %296 = vmatprep.subr.mxu0 0.0
        %297 = vmatpush1.msra.mxu0 %v272
        %298 = vmatprep.subr.mxu0 0.0
        %299 = vmatpush1.msra.mxu0 %v273
        %300 = vmatprep.subr.mxu0 0.0
        %301 = vmatpush1.msra.mxu0 %v274
        %302 = vmatprep.subr.mxu0 0.0
        %303 = vmatpush1.msra.mxu0 %v275
        %304 = vmatprep.subr.mxu0 0.0
        %305 = vmatpush1.msra.mxu0 %v276
        %306 = vmatprep.subr.mxu0 0.0
        %307 = vmatpush1.msra.mxu0 %v277
        %308 = vmatprep.subr.mxu0 0.0
        %309 = vmatpush1.msra.mxu0 %v278
        %310 = vmatprep.subr.mxu0 0.0
        %311 = vmatpush1.msra.mxu0 %v279
        %312 = vmatprep.subr.mxu0 0.0
        %313 = vmatpush1.msra.mxu0 %v280
        %314 = vmatprep.subr.mxu0 0.0
        %315 = vmatpush1.msra.mxu0 0.0
        %316 = vmatprep.subr.mxu0 0.0
        %317 = vmatpush1.msra.mxu0 0.0
        %318 = vmatprep.subr.mxu0 0.0
        %319 = vmatpush1.msra.mxu0 0.0
        %320 = vmatprep.subr.mxu0 0.0
        %321 = vmatpush1.msra.mxu0 0.0
        %322 = vmatprep.subr.mxu0 0.0
        %323 = vmatpush1.msra.mxu0 0.0
        %324 = vmatprep.subr.mxu0 0.0
        %325 = vmatpush1.msra.mxu0 0.0
        %326 = vmatprep.subr.mxu0 0.0
        %327 = vmatpush1.msra.mxu0 0.0
        %328 = vmatprep.subr.mxu0 0.0
        %329 = vmatpush1.msra.mxu0 0.0
        %330 = vmatprep.subr.mxu0 0.0
        %331 = vmatpush1.msra.mxu0 0.0
        %332 = vmatprep.subr.mxu0 0.0
        %333 = vmatpush1.msra.mxu0 0.0
        %334 = vmatprep.subr.mxu0 0.0
        %335 = vmatpush1.msra.mxu0 0.0
        %336 = vmatprep.subr.mxu0 0.0
        %337 = vmatpush1.msra.mxu0 0.0
        %338 = vmatprep.subr.mxu0 0.0
        %339 = vmatpush1.msra.mxu0 0.0
        %340 = vmatprep.subr.mxu0 0.0
        %341 = vmatpush1.msra.mxu0 0.0
        %342 = vmatprep.subr.mxu0 0.0
        %343 = vmatpush1.msra.mxu0 0.0
        %344 = vmatprep.subr.mxu0 0.0
        %345 = vmatpush1.msra.mxu0 0.0
        %346 = vmatprep.mubr.f32.mxu0 0.0
        %347 = vmatmul.mubr.f32.gmra.mrb[0].mxu0 %v264
        %v348 = vpop.f32.mrb[0].mxu0
        %v349 = vadd.f32 %v281, %v348
        %v350 = vpop.f32.mrb[0].mxu0
        %351 = vdwg.mxu0
        %v352 = vld [vmem:[%s249] sm:$0xff]
        %354 = vset.pattern.permute.xlu0 0
        %355 = vperm.xlu0 %354, %v352
        %v356 = vpop.permute.xlu0 %355
        %v358 = vmul.f32 %v349, %v356
        %vm359 = vcmask 261120
        %360 = vst.msk [vmem:[%s238] sm:$0xff] %vm359, %v358
        %s361 = sand.u32 %s143, 1
        %s362 = scalar_lea.sflag [#allocation3], %s361
        %s363 = sand.u32 %s143, 1
        %s364 = smul.addr %s363, 8
        %s365 = scalar_lea.vmem [#allocation2], %s364
        // Predicated region
        $region37: #{tpu_custom_call.1} parent=35 // pred_check
          %p366 = pneg %p153
        $region38: #{tpu_custom_call.1} parent=35 // pred_check_branch
          %368 = sbr.rel (%p366) target = $region40
        $region39: #{tpu_custom_call.1} parent=35 // pred_region
          %s369 = sadd.s32 %s23, %s22
          %s371 = ssub.s32 128, 128
          %372 = vsyncadd %s362, %s371
          %s373 = smul.addr %s369, 128
          %s374 = scalar_lea.hbm %s4, %s373
          %s376 = sshll.u32 %s365, 4
          %s377 = int_to_ptr.vmem [resolvable:$true] %s376
          %379 = dma.vmem_to_hbm [thread:$0]  %s377, 128, %s374, %s362
        $region40: #{tpu_custom_call.1} parent=35 // pred_fallthru
          _
      $region36: #{tpu_custom_call.1} parent=5 // pred_fallthru
        _
      %p380 = scmp.le.s32.totalorder 2, %s13
      // Predicated region
      $region41: #{tpu_custom_call.1} parent=5 // pred_check
        %p381 = pneg %p380
      $region42: #{tpu_custom_call.1} parent=5 // pred_check_branch
        %383 = sbr.rel (%p381) target = $region44
      $region43: #{tpu_custom_call.1} parent=5 // pred_region
        %s384 = ssub.s32 %s13, 2
        // Predicated region
        $region45: #{tpu_custom_call.1} parent=43 // pred_check
          %p385 = pneg %p159
        $region46: #{tpu_custom_call.1} parent=43 // pred_check_branch
          %387 = sbr.rel (%p385) target = $region48
        $region47: #{tpu_custom_call.1} parent=43 // pred_region
          %s388 = sand.u32 %s144, 1
          %s389 = scalar_lea.sflag [#allocation3], %s388
          %s390 = sand.u32 %s144, 1
          %s391 = smul.addr %s390, 8
          %s392 = scalar_lea.vmem [#allocation2], %s391
          %393 = dma.done %s389, 128
        $region48: #{tpu_custom_call.1} parent=43 // pred_fallthru
          _
      $region44: #{tpu_custom_call.1} parent=5 // pred_fallthru
        _
    $region6: #{tpu_custom_call.1} parent=1 // loop_footer
      %s17 = sadd.s32 1, %s13
    $region7: #{tpu_custom_call.1} parent=1 // loop_footer_branch
      %12 = sbr.rel target = $region3
    $region8: #{tpu_custom_call.1} parent=1 // loop_exit
      _
    %394 = vsyncpa [#allocation3], 1
    %s395 = scalar_lea.sflag [#allocation3], 1
    %396 = vsyncpa %s395, 1

</llo_original>
